<compile_context>
chip_gen: v6e
topology: v6e:2x2x1
jax: 0.10.0
libtpu: 0.0.40
codegen_flags: <defaults>
</compile_context>

<pallas_src>
import functools

import jax
import jax.numpy as jnp
from jax.experimental import pallas as pl
from jax.experimental.pallas import tpu as pltpu


def _round_up(x, m):
    return ((x + m - 1) // m) * m


def _physical_vmem_bytes():
    # 128 MiB on v5e/v6e, 64 MiB per TensorCore on v7x.
    try:
        return int(pltpu.get_tpu_info().vmem_capacity_bytes)
    except Exception:
        return 64 * 1024 * 1024  # conservative default (v7x per-core VMEM)


_VMEM_PHYS = _physical_vmem_bytes()
# Leave ~25% headroom for Mosaic internal scratch / metadata:
# 48 MiB on v7x, 96 MiB on v5e/v6e.
_VMEM_LIMIT = (_VMEM_PHYS * 3) // 4


def _node_apply_kernel(x_ref, w_ref, b_ref, o_ref):
    """One (tm, tn) output tile: o = relu(x @ w + b), full-K contraction."""
    h = jnp.dot(x_ref[...], w_ref[...], preferred_element_type=jnp.float32)
    h = h + b_ref[...]          # bias broadcast over rows
    h = jnp.maximum(h, 0.0)     # activation = ReLU
    o_ref[...] = h.astype(o_ref.dtype)


@functools.partial(
    jax.jit,
    static_argnames=("tm_eff", "tn_eff", "m_pad", "single_buffer_resident",
                     "vmem_limit"),
)
def _node_apply_impl(x, w, b, *, tm_eff, tn_eff, m_pad, single_buffer_resident,
                     vmem_limit):
    N, K = x.shape
    M = w.shape[1]

    # Pad out_feats to a multiple of 128: unmasked lane-dense output stores,
    # fuller MXU pass. Zero columns are sliced off below (relu(x@0+0)=0).
    if m_pad != M:
        w = jnp.pad(w, ((0, 0), (0, m_pad - M)))
        b = jnp.pad(b, (0, m_pad - M))
    b2d = b.reshape(1, m_pad)

    # W / bias block index is constant across the inner row sweep -> resident
    # in VMEM; double-buffering them buys nothing, so single-buffer to free
    # K*tn*itemsize of VMEM for bigger row tiles.
    resident = dict(pipeline_mode=pl.Buffered(1)) if single_buffer_resident else {}

    # Column axis OUTER, row axis INNER: W / bias stay resident while the
    # kernel sweeps node-row blocks.
    grid = (pl.cdiv(m_pad, tn_eff), pl.cdiv(N, tm_eff))

    out = pl.pallas_call(
        _node_apply_kernel,
        out_shape=jax.ShapeDtypeStruct((N, m_pad), x.dtype),
        grid_spec=pltpu.PrefetchScalarGridSpec(
            num_scalar_prefetch=0,
            grid=grid,
            in_specs=[
                pl.BlockSpec((tm_eff, K), lambda j, i: (i, 0)),              # x rows
                pl.BlockSpec((K, tn_eff), lambda j, i: (0, j), **resident),  # W
                pl.BlockSpec((1, tn_eff), lambda j, i: (0, j), **resident),  # bias
            ],
            out_specs=pl.BlockSpec((tm_eff, tn_eff), lambda j, i: (i, j)),
        ),
        compiler_params=pltpu.CompilerParams(
            dimension_semantics=("parallel", "parallel"),
            vmem_limit_bytes=vmem_limit,
        ),
    )(x, w, b2d)

    return out[:, :M] if m_pad != M else out


def node_apply(x, w, b, *, tm=None, tn=512):
    """ReLU(x @ w + b). x: (N, in_feats), w: (in_feats, out_feats), b: (out_feats,)."""
    N, K = x.shape
    K2, M = w.shape
    assert K == K2 and b.shape == (M,)

    itemsize = max(jnp.dtype(x.dtype).itemsize, jnp.dtype(w.dtype).itemsize)
    # dtype-aware sublane granularity: 8 for f32, 16 for bf16, 32 for int8/fp8.
    sublane = 8 * max(1, 4 // itemsize)

    # Generation-aware default row tile: bigger on 128 MiB-VMEM chips (v5e/v6e).
    if tm is None:
        tm = 1024 if _VMEM_PHYS >= 128 * 1024 * 1024 else 512
    tn = _round_up(tn, 128)
    m_pad = _round_up(M, 128)

    # Row tile: keep >= 2 row blocks whenever possible so v7x megacore can
    # shard the node axis across both TensorCores (one extra ~0.35us grid
    # step on single-TC chips is noise).
    tm_eff = min(_round_up(tm, sublane),
                 max(sublane, _round_up(pl.cdiv(N, 2), sublane)))

    # Worst-case (everything double-buffered) VMEM working set for a tile
    # config, including the output tile and the bias.
    def ws_bytes(tn_blk):
        return (2 * tm_eff * K          # x (double-buffered)
                + 2 * K * tn_blk        # W
                + 2 * tn_blk            # bias
                + 2 * tm_eff * tn_blk   # out (double-buffered)
                ) * itemsize

    # Column tile: cover the full (padded) out_feats whenever it fits VMEM so
    # X is read from HBM exactly once; otherwise fall back to tn-wide column
    # blocks and accept ceil(m_pad/tn) re-reads of X.
    tn_eff = m_pad if (m_pad <= tn or ws_bytes(m_pad) <= _VMEM_LIMIT) else tn

    # Full-K tiles must fit VMEM (no K grid axis) — fine for typical GNN
    # feature sizes.
    # TODO(synk): add a K-tiled accumulator fallback for in_feats that overflow VMEM.
    assert ws_bytes(tn_eff) <= _VMEM_LIMIT, (
        "tile working set exceeds the VMEM budget; reduce tm/tn or tile K")

    # TODO(synk): optional bf16 cast of x/w (f32 accumulate) would halve HBM
    # traffic on this HBM-bound kernel; kept f32 to match torch numerics.

    last_err = None
    for single_buffer_resident in (True, False):
        try:
            return _node_apply_impl(
                x, w, b,
                tm_eff=tm_eff, tn_eff=tn_eff, m_pad=m_pad,
                single_buffer_resident=single_buffer_resident,
                vmem_limit=_VMEM_LIMIT,
            )
        except Exception as e:  # fall back if Buffered(1) is not supported
            last_err = e
    raise last_err


def node_apply_ref(x, w, b):
    return jnp.maximum(x @ w + b, 0.0)


if __name__ == "__main__":
    # Small GNN-like shapes: N nodes, in_feats -> out_feats linear + ReLU.
    N, in_feats, out_feats = 512, 128, 64

    key = jax.random.PRNGKey(0)
    kx, kw, kb = jax.random.split(key, 3)

    x = jax.random.normal(kx, (N, in_feats), dtype=jnp.float32)

    # Deterministic parameter init (matches torch Linear's uniform range).
    bound = 1.0 / jnp.sqrt(jnp.float32(in_feats))
    w = jax.random.uniform(
        kw, (in_feats, out_feats), minval=-bound, maxval=bound, dtype=jnp.float32
    )
    b = jax.random.uniform(
        kb, (out_feats,), minval=-bound, maxval=bound, dtype=jnp.float32
    )

    out = node_apply(x, w, b)
    out = jax.block_until_ready(out)

    ref = node_apply_ref(x, w, b)
    assert out.shape == ref.shape
    assert jnp.allclose(out, ref, atol=1e-5, rtol=1e-5), "mismatch vs reference"

    print("KERNEL_OK")
</pallas_src>

<mosaic_0001>
module attributes {stable_mosaic.version = 11 : i64} {
  func.func @_node_apply_kernel(%arg0: i32, %arg1: i32, %arg2: memref<256x128xf32, #tpu.memory_space<vmem>>, %arg3: memref<128x128xf32, #tpu.memory_space<vmem>>, %arg4: memref<1x128xf32, #tpu.memory_space<vmem>>, %arg5: memref<256x128xf32, #tpu.memory_space<vmem>>) attributes {dimension_semantics = [#tpu.dimension_semantics<parallel>, #tpu.dimension_semantics<parallel>], iteration_bounds = array<i64: 1, 2>, scalar_prefetch = 0 : i64, scratch_operands = 0 : i64, tpu.core_type = #tpu.core_type<tc>, window_params = [{transform_indices = @transform_0, window_bounds = array<i64: 256, 128>}, {pipeline_mode = #tpu.pipeline_mode<synchronous>, transform_indices = @transform_1, window_bounds = array<i64: 128, 128>}, {pipeline_mode = #tpu.pipeline_mode<synchronous>, transform_indices = @transform_2, window_bounds = array<i64: 1, 128>}, {transform_indices = @transform_3, window_bounds = array<i64: 256, 128>}]} {
    %c0 = arith.constant 0 : index
    %c0_0 = arith.constant 0 : index
    %0 = vector.load %arg2[%c0, %c0_0] : memref<256x128xf32, #tpu.memory_space<vmem>>, vector<256x128xf32>
    %c0_1 = arith.constant 0 : index
    %c0_2 = arith.constant 0 : index
    %1 = vector.load %arg3[%c0_1, %c0_2] : memref<128x128xf32, #tpu.memory_space<vmem>>, vector<128x128xf32>
    %cst = arith.constant dense<0.000000e+00> : vector<256x128xf32>
    %2 = tpu.matmul %0, %1, %cst {dimension_numbers = #tpu.dot_dimension_numbers<[1], [0], [0], [1], [0, 0, 1, 1], [], []>} : vector<256x128xf32>, vector<128x128xf32>, vector<256x128xf32> -> vector<256x128xf32>
    %c0_3 = arith.constant 0 : index
    %c0_4 = arith.constant 0 : index
    %3 = vector.load %arg4[%c0_3, %c0_4] : memref<1x128xf32, #tpu.memory_space<vmem>>, vector<1x128xf32>
    %4 = vector.broadcast %3 : vector<1x128xf32> to vector<256x128xf32>
    %5 = arith.addf %2, %4 : vector<256x128xf32>
    %cst_5 = arith.constant 0.000000e+00 : f32
    %6 = vector.broadcast %cst_5 : f32 to vector<256x128xf32>
    %7 = arith.maximumf %5, %6 : vector<256x128xf32>
    %c0_6 = arith.constant 0 : index
    %c0_7 = arith.constant 0 : index
    %8 = vector.load %arg5[%c0_6, %c0_7] : memref<256x128xf32, #tpu.memory_space<vmem>>, vector<256x128xf32>
    tpu.vector_store %arg5[%c0_6, %c0_7], %7 {strides = array<i32>} : memref<256x128xf32, #tpu.memory_space<vmem>>, vector<256x128xf32>,
    return
  }
  func.func @transform_0(%arg0: i32, %arg1: i32) -> (i32, i32) {
    %c0_i32 = arith.constant 0 : i32
    %c0_i32_0 = arith.constant 0 : i32
    return %arg1, %c0_i32 : i32, i32
  }
  func.func @transform_1(%arg0: i32, %arg1: i32) -> (i32, i32) {
    %c0_i32 = arith.constant 0 : i32
    %c0_i32_0 = arith.constant 0 : i32
    return %c0_i32, %arg0 : i32, i32
  }
  func.func @transform_2(%arg0: i32, %arg1: i32) -> (i32, i32) {
    %c0_i32 = arith.constant 0 : i32
    %c0_i32_0 = arith.constant 0 : i32
    return %c0_i32, %arg0 : i32, i32
  }
  func.func @transform_3(%arg0: i32, %arg1: i32) -> (i32, i32) {
    %c0_i32 = arith.constant 0 : i32
    return %arg1, %arg0 : i32, i32
  }
}

module attributes {stable_mosaic.version = 11 : i64} {
  func.func @_node_apply_kernel(%arg0: i32, %arg1: i32, %arg2: memref<256x128xf32, #tpu.memory_space<vmem>>, %arg3: memref<128x128xf32, #tpu.memory_space<vmem>>, %arg4: memref<1x128xf32, #tpu.memory_space<vmem>>, %arg5: memref<256x128xf32, #tpu.memory_space<vmem>>) attributes {dimension_semantics = [#tpu.dimension_semantics<parallel>, #tpu.dimension_semantics<parallel>], iteration_bounds = array<i64: 1, 2>, scalar_prefetch = 0 : i64, scratch_operands = 0 : i64, tpu.core_type = #tpu.core_type<tc>, window_params = [{transform_indices = @transform_0, window_bounds = array<i64: 256, 128>}, {transform_indices = @transform_1, window_bounds = array<i64: 128, 128>}, {transform_indices = @transform_2, window_bounds = array<i64: 1, 128>}, {transform_indices = @transform_3, window_bounds = array<i64: 256, 128>}]} {
    %c0 = arith.constant 0 : index
    %c0_0 = arith.constant 0 : index
    %0 = vector.load %arg2[%c0, %c0_0] : memref<256x128xf32, #tpu.memory_space<vmem>>, vector<256x128xf32>
    %c0_1 = arith.constant 0 : index
    %c0_2 = arith.constant 0 : index
    %1 = vector.load %arg3[%c0_1, %c0_2] : memref<128x128xf32, #tpu.memory_space<vmem>>, vector<128x128xf32>
    %cst = arith.constant dense<0.000000e+00> : vector<256x128xf32>
    %2 = tpu.matmul %0, %1, %cst {dimension_numbers = #tpu.dot_dimension_numbers<[1], [0], [0], [1], [0, 0, 1, 1], [], []>} : vector<256x128xf32>, vector<128x128xf32>, vector<256x128xf32> -> vector<256x128xf32>
    %c0_3 = arith.constant 0 : index
    %c0_4 = arith.constant 0 : index
    %3 = vector.load %arg4[%c0_3, %c0_4] : memref<1x128xf32, #tpu.memory_space<vmem>>, vector<1x128xf32>
    %4 = vector.broadcast %3 : vector<1x128xf32> to vector<256x128xf32>
    %5 = arith.addf %2, %4 : vector<256x128xf32>
    %cst_5 = arith.constant 0.000000e+00 : f32
    %6 = vector.broadcast %cst_5 : f32 to vector<256x128xf32>
    %7 = arith.maximumf %5, %6 : vector<256x128xf32>
    %c0_6 = arith.constant 0 : index
    %c0_7 = arith.constant 0 : index
    %8 = vector.load %arg5[%c0_6, %c0_7] : memref<256x128xf32, #tpu.memory_space<vmem>>, vector<256x128xf32>
    tpu.vector_store %arg5[%c0_6, %c0_7], %7 {strides = array<i32>} : memref<256x128xf32, #tpu.memory_space<vmem>>, vector<256x128xf32>,
    return
  }
  func.func @transform_0(%arg0: i32, %arg1: i32) -> (i32, i32) {
    %c0_i32 = arith.constant 0 : i32
    %c0_i32_0 = arith.constant 0 : i32
    return %arg1, %c0_i32 : i32, i32
  }
  func.func @transform_1(%arg0: i32, %arg1: i32) -> (i32, i32) {
    %c0_i32 = arith.constant 0 : i32
    %c0_i32_0 = arith.constant 0 : i32
    return %c0_i32, %arg0 : i32, i32
  }
  func.func @transform_2(%arg0: i32, %arg1: i32) -> (i32, i32) {
    %c0_i32 = arith.constant 0 : i32
    %c0_i32_0 = arith.constant 0 : i32
    return %c0_i32, %arg0 : i32, i32
  }
  func.func @transform_3(%arg0: i32, %arg1: i32) -> (i32, i32) {
    %c0_i32 = arith.constant 0 : i32
    return %arg1, %arg0 : i32, i32
  }
}

</mosaic_0001>

<llo_original>
// kernel: _node_apply_impl.1
$region0: #{_node_apply_impl.1}
  #allocation0 [shape = 'u32[]', space=smem, size = 0x4, offset = 0x4, fixed_abs, tag = 'smem constant byte address 0x4 - core index']
  #allocation1 [shape = 'u32[144,128]{1,0:T(1,128)}', space=vmem, size = 0x12000, scoped, tag = 'internal scratch']
  %s0 = inlined_call_operand.hbm [shape: f32[512,128], index: 0, kind: input, shape index: {}]
  %s1 = inlined_call_operand.vmem [shape: f32[128,128], index: 1, kind: input, shape index: {}]
  %s2 = inlined_call_operand.vmem [shape: f32[1,128], index: 2, kind: input, shape index: {}]
  %s3 = inlined_call_operand.vmem [shape: f32[512,128], index: 3, kind: output, shape index: {}]
  %s4 = sld [smem:[#allocation0]]
  $region49: #{_node_apply_impl.1} parent=0
    _
  %s6 = ssub.s32 1, %s4
  %s7 = scalar_select 0, %s6, %s4
  $region1: #{_node_apply_impl.1} parent=0
    #allocation2 [shape = 'u8[262144]{0}', space=vmem, size = 0x40000, scoped, tag = 'input window, operand 0']
    #allocation3 [shape = 's32[2]{0}', space=sflag, size = 0x8, scoped, tag = 'scoped memory for _node_apply_impl.1']
    %8 = vsyncpa [#allocation3], 0
    %s9 = scalar_lea.sflag [#allocation3], 1
    %10 = vsyncpa %s9, 0
    loop: start=0, step=1, limit=4
    $region2: #{_node_apply_impl.1} parent=1 // loop_pre_header
      _
    $region3: #{_node_apply_impl.1} parent=1 // loop_header
      %s12 = sphi 0, %s16
      %p13 = scmp.ge.s32.totalorder %s12, 4
      %s19 = sphi 0, %s31
      %s20 = sphi 0, %s27
      %s21 = sphi 0, %s19
      %s22 = sphi 0, %s20
      %s23 = sphi 0, %s21
      %s24 = sphi 0, %s22
      %s34 = sphi 0, %s36
      %s37 = sphi 0, %s34
      %s38 = sphi 0, %s37
      %s54 = sphi 0, %s38
      %s60 = sphi 0, %s62
      %s63 = sphi 0, %s60
      %s64 = sphi 0, %s63
      %s80 = sphi 0, %s64
      %s86 = sphi 0, %s88
      %s89 = sphi 0, %s86
      %s90 = sphi 0, %s89
      %s106 = sphi 0, %s90
      %s114 = sphi 0, %s116
      %s117 = sphi 0, %s114
      %s118 = sphi 0, %s117
      %s134 = sphi 0, %s118
    $region4: #{_node_apply_impl.1} parent=1 // loop_header_branch
      %15 = sbr.rel (%p13) target = $region8
    $region5: #{_node_apply_impl.1} parent=1 // loop_body
      %s17 = ssub.s32 %s12, 1
      %s18 = ssub.s32 %s12, 2
      %s25 = sadd.s32 1, %s20
      %p26 = scmp.ge.s32.totalorder %s25, 2
      %s27 = scalar_select %p26, 0, %s25
      %s28 = sadd.s32 1, %s19
      %s29 = scalar_select %p26, %s28, %s19
      %p30 = scmp.ge.s32.totalorder %s29, 1
      %s31 = scalar_select %p30, 0, %s29
      %s32 = ssub.s32 %s20, %s27
      %p33 = scmp.eq.s32.totalorder %s32, 0
      %s35 = sadd.s32 %s34, 1
      %s36 = scalar_select %p33, %s34, %s35
      %p39 = pneg %p33
      %p40 = scmp.eq.s32.totalorder %s12, 1
      %p41 = por %p39, %p40
      %p42 = scmp.ne.s32.totalorder %s34, %s37
      %p43 = scmp.eq.s32.totalorder %s12, 0
      %p44 = por %p42, %p43
      %p45 = scmp.ne.s32.totalorder %s34, %s37
      %p46 = scmp.eq.s32.totalorder %s17, 1
      %p47 = por %p45, %p46
      %p48 = scmp.ne.s32.totalorder %s37, %s38
      %p49 = scmp.eq.s32.totalorder %s17, 0
      %p50 = por %p48, %p49
      %p51 = scmp.ne.s32.totalorder %s37, %s38
      %p52 = scmp.eq.s32.totalorder %s18, 1
      %p53 = por %p51, %p52
      %p55 = scmp.ne.s32.totalorder %s38, %s54
      %p56 = scmp.eq.s32.totalorder %s18, 0
      %p57 = por %p55, %p56
      %s58 = ssub.s32 %s19, %s31
      %p59 = scmp.eq.s32.totalorder %s58, 0
      %s61 = sadd.s32 %s60, 1
      %s62 = scalar_select %p59, %s60, %s61
      %p65 = pneg %p59
      %p66 = scmp.eq.s32.totalorder %s12, 1
      %p67 = por %p65, %p66
      %p68 = scmp.ne.s32.totalorder %s60, %s63
      %p69 = scmp.eq.s32.totalorder %s12, 0
      %p70 = por %p68, %p69
      %p71 = scmp.ne.s32.totalorder %s60, %s63
      %p72 = scmp.eq.s32.totalorder %s17, 1
      %p73 = por %p71, %p72
      %p74 = scmp.ne.s32.totalorder %s63, %s64
      %p75 = scmp.eq.s32.totalorder %s17, 0
      %p76 = por %p74, %p75
      %p77 = scmp.ne.s32.totalorder %s63, %s64
      %p78 = scmp.eq.s32.totalorder %s18, 1
      %p79 = por %p77, %p78
      %p81 = scmp.ne.s32.totalorder %s64, %s80
      %p82 = scmp.eq.s32.totalorder %s18, 0
      %p83 = por %p81, %p82
      %s84 = ssub.s32 %s19, %s31
      %p85 = scmp.eq.s32.totalorder %s84, 0
      %s87 = sadd.s32 %s86, 1
      %s88 = scalar_select %p85, %s86, %s87
      %p91 = pneg %p85
      %p92 = scmp.eq.s32.totalorder %s12, 1
      %p93 = por %p91, %p92
      %p94 = scmp.ne.s32.totalorder %s86, %s89
      %p95 = scmp.eq.s32.totalorder %s12, 0
      %p96 = por %p94, %p95
      %p97 = scmp.ne.s32.totalorder %s86, %s89
      %p98 = scmp.eq.s32.totalorder %s17, 1
      %p99 = por %p97, %p98
      %p100 = scmp.ne.s32.totalorder %s89, %s90
      %p101 = scmp.eq.s32.totalorder %s17, 0
      %p102 = por %p100, %p101
      %p103 = scmp.ne.s32.totalorder %s89, %s90
      %p104 = scmp.eq.s32.totalorder %s18, 1
      %p105 = por %p103, %p104
      %p107 = scmp.ne.s32.totalorder %s90, %s106
      %p108 = scmp.eq.s32.totalorder %s18, 0
      %p109 = por %p107, %p108
      %s110 = ssub.s32 %s20, %s27
      %s111 = ssub.s32 %s19, %s31
      %s112 = sor.u32 %s110, %s111
      %p113 = scmp.eq.s32.totalorder %s112, 0
      %s115 = sadd.s32 %s114, 1
      %s116 = scalar_select %p113, %s114, %s115
      %p119 = pneg %p113
      %p120 = scmp.eq.s32.totalorder %s12, 1
      %p121 = por %p119, %p120
      %p122 = scmp.ne.s32.totalorder %s114, %s117
      %p123 = scmp.eq.s32.totalorder %s12, 0
      %p124 = por %p122, %p123
      %p125 = scmp.ne.s32.totalorder %s114, %s117
      %p126 = scmp.eq.s32.totalorder %s17, 1
      %p127 = por %p125, %p126
      %p128 = scmp.ne.s32.totalorder %s117, %s118
      %p129 = scmp.eq.s32.totalorder %s17, 0
      %p130 = por %p128, %p129
      %p131 = scmp.ne.s32.totalorder %s117, %s118
      %p132 = scmp.eq.s32.totalorder %s18, 1
      %p133 = por %p131, %p132
      %p135 = scmp.ne.s32.totalorder %s118, %s134
      %p136 = scmp.eq.s32.totalorder %s18, 0
      %p137 = por %p135, %p136
      %p138 = scmp.le.s32.totalorder 1, %s12
      %p139 = scmp.lt.s32.totalorder %s12, 3
      %p140 = pnand %p138, %p139
      %p141 = pneg %p140
      // Predicated region
      $region9: #{_node_apply_impl.1} parent=5 // pred_check
        _
      $region10: #{_node_apply_impl.1} parent=5 // pred_check_branch
        %143 = sbr.rel (%p140) target = $region12
      $region11: #{_node_apply_impl.1} parent=5 // pred_region
        %s144 = ssub.s32 %s12, 1
        // Predicated region
        $region13: #{_node_apply_impl.1} parent=11 // pred_check
          %p145 = pneg %p76
        $region14: #{_node_apply_impl.1} parent=11 // pred_check_branch
          %147 = sbr.rel (%p145) target = $region16
        $region15: #{_node_apply_impl.1} parent=11 // pred_region
          %p148 = scmp.lt.s32.totalorder %s21, 0
          %s149 = scalar_select %p148, %s21, 0
          %s150 = smul.addr %s149, 8
          %s151 = scalar_lea.vmem %s1, %s150
        $region16: #{_node_apply_impl.1} parent=11 // pred_fallthru
          _
        // Predicated region
        $region17: #{_node_apply_impl.1} parent=11 // pred_check
          %p152 = pneg %p102
        $region18: #{_node_apply_impl.1} parent=11 // pred_check_branch
          %154 = sbr.rel (%p152) target = $region20
        $region19: #{_node_apply_impl.1} parent=11 // pred_region
          %p155 = scmp.lt.s32.totalorder %s21, 0
          %s156 = scalar_select %p155, %s21, 0
          %s157 = scalar_lea.vmem %s2, %s156
        $region20: #{_node_apply_impl.1} parent=11 // pred_fallthru
          _
      $region12: #{_node_apply_impl.1} parent=5 // pred_fallthru
        _
      %p158 = scmp.lt.s32.totalorder %s12, 2
      // Predicated region
      $region21: #{_node_apply_impl.1} parent=5 // pred_check
        %p159 = pneg %p158
      $region22: #{_node_apply_impl.1} parent=5 // pred_check_branch
        %161 = sbr.rel (%p159) target = $region24
      $region23: #{_node_apply_impl.1} parent=5 // pred_region
        // Predicated region
        $region25: #{_node_apply_impl.1} parent=23 // pred_check
          %p162 = pneg %p44
        $region26: #{_node_apply_impl.1} parent=23 // pred_check_branch
          %164 = sbr.rel (%p162) target = $region28
        $region27: #{_node_apply_impl.1} parent=23 // pred_region
          %s165 = sand.u32 %s34, 1
          %s166 = scalar_lea.sflag [#allocation3], %s165
          %s167 = sand.u32 %s34, 1
          %s168 = smul.addr %s167, 256
          %s169 = scalar_lea.vmem [#allocation2], %s168
          %s170 = smul.u32 32, %s20
          %s172 = ssub.s32 4096, 4096
          %173 = vsyncadd %s166, %s172
          %s174 = smul.addr %s170, 128
          %s175 = scalar_lea.hbm %s0, %s174
          %s176 = sshll.u32 %s169, 4
          %s177 = int_to_ptr.vmem [resolvable:$true] %s176
          %182 = dma.hbm_to_vmem [thread:$0]  %s175, 4096, %s177, %s166, 128, 128, 8
        $region28: #{_node_apply_impl.1} parent=23 // pred_fallthru
          _
      $region24: #{_node_apply_impl.1} parent=5 // pred_fallthru
        _
      %p183 = scmp.le.s32.totalorder 1, %s12
      %p184 = scmp.lt.s32.totalorder %s12, 3
      %p185 = pnand %p183, %p184
      %p186 = pneg %p185
      // Predicated region
      $region29: #{_node_apply_impl.1} parent=5 // pred_check
        _
      $region30: #{_node_apply_impl.1} parent=5 // pred_check_branch
        %188 = sbr.rel (%p185) target = $region32
      $region31: #{_node_apply_impl.1} parent=5 // pred_region
        %s189 = ssub.s32 %s12, 1
        %s190 = sand.u32 %s37, 1
        %s191 = scalar_lea.sflag [#allocation3], %s190
        %s192 = sand.u32 %s37, 1
        %s193 = smul.addr %s192, 256
        %s194 = scalar_lea.vmem [#allocation2], %s193
        // Predicated region
        $region33: #{_node_apply_impl.1} parent=31 // pred_check
          %p195 = pneg %p50
        $region34: #{_node_apply_impl.1} parent=31 // pred_check_branch
          %197 = sbr.rel (%p195) target = $region36
        $region35: #{_node_apply_impl.1} parent=31 // pred_region
          %198 = dma.done %s191, 4096
        $region36: #{_node_apply_impl.1} parent=31 // pred_fallthru
          _
        %s199 = sand.u32 %s37, 1
        %s200 = scalar_lea.sflag [#allocation3], %s199
        %s201 = sand.u32 %s37, 1
        %s202 = smul.addr %s201, 256
        %s203 = scalar_lea.vmem [#allocation2], %s202
        %p204 = pneg %p50
        %p205 = pneg %p47
        %p206 = scmp.lt.s32.totalorder %s21, 0
        %s207 = scalar_select %p206, %s21, 0
        %s208 = smul.addr %s207, 8
        %s209 = scalar_lea.vmem %s1, %s208
        %p210 = pneg %p76
        %p211 = pneg %p73
        %p212 = scmp.lt.s32.totalorder %s21, 0
        %s213 = scalar_select %p212, %s21, 0
        %s214 = scalar_lea.vmem %s2, %s213
        %p215 = pneg %p102
        %p216 = pneg %p99
        %p217 = pneg %p130
        %p218 = pneg %p127
        %s219 = smul.u32 32, %s22
        %p220 = scmp.lt.s32.totalorder %s219, 63
        %s221 = scalar_select %p220, %s219, 63
        %p222 = scmp.lt.s32.totalorder %s21, 0
        %s223 = scalar_select %p222, %s21, 0
        %s224 = sadd.s32 %s223, %s221
        %s225 = smul.addr %s224, 8
        %s226 = scalar_lea.vmem %s3, %s225
        %s227 = smul.u32 32, %s22
        %p228 = scmp.lt.s32.totalorder %s21, 0
        %s229 = scalar_select %p228, %s21, 0
        %s230 = smul.addr %s229, 8
        %s231 = scalar_lea.vmem %s1, %s230
        %p232 = scmp.lt.s32.totalorder %s21, 0
        %s233 = scalar_select %p232, %s21, 0
        %s234 = scalar_lea.vmem %s2, %s233
        %s235 = smul.u32 32, %s22
        %p236 = scmp.lt.s32.totalorder %s235, 63
        %s237 = scalar_select %p236, %s235, 63
        %p238 = scmp.lt.s32.totalorder %s21, 0
        %s239 = scalar_select %p238, %s21, 0
        %s240 = sadd.s32 %s239, %s237
        %s241 = smul.addr %s240, 8
        %s242 = scalar_lea.vmem %s3, %s241
        %s243 = smul.u32 32, %s22
        %v244 = vld [vmem:[%s194] sm:$0xff]
        %v245 = vld [vmem:[%s194 + $0x8] sm:$0xff]
        %v246 = vld [vmem:[%s194 + $0x10] sm:$0xff]
        %v247 = vld [vmem:[%s194 + $0x18] sm:$0xff]
        %v248 = vld [vmem:[%s194 + $0x20] sm:$0xff]
        %v249 = vld [vmem:[%s194 + $0x28] sm:$0xff]
        %v250 = vld [vmem:[%s194 + $0x30] sm:$0xff]
        %v251 = vld [vmem:[%s194 + $0x38] sm:$0xff]
        %v252 = vld [vmem:[%s194 + $0x40] sm:$0xff]
        %v253 = vld [vmem:[%s194 + $0x48] sm:$0xff]
        %v254 = vld [vmem:[%s194 + $0x50] sm:$0xff]
        %v255 = vld [vmem:[%s194 + $0x58] sm:$0xff]
        %v256 = vld [vmem:[%s194 + $0x60] sm:$0xff]
        %v257 = vld [vmem:[%s194 + $0x68] sm:$0xff]
        %v258 = vld [vmem:[%s194 + $0x70] sm:$0xff]
        %v259 = vld [vmem:[%s194 + $0x78] sm:$0xff]
        %v260 = vld [vmem:[%s194 + $0x80] sm:$0xff]
        %v261 = vld [vmem:[%s194 + $0x88] sm:$0xff]
        %v262 = vld [vmem:[%s194 + $0x90] sm:$0xff]
        %v263 = vld [vmem:[%s194 + $0x98] sm:$0xff]
        %v264 = vld [vmem:[%s194 + $0xa0] sm:$0xff]
        %v265 = vld [vmem:[%s194 + $0xa8] sm:$0xff]
        %v266 = vld [vmem:[%s194 + $0xb0] sm:$0xff]
        %v267 = vld [vmem:[%s194 + $0xb8] sm:$0xff]
        %v268 = vld [vmem:[%s194 + $0xc0] sm:$0xff]
        %v269 = vld [vmem:[%s194 + $0xc8] sm:$0xff]
        %v270 = vld [vmem:[%s194 + $0xd0] sm:$0xff]
        %v271 = vld [vmem:[%s194 + $0xd8] sm:$0xff]
        %v272 = vld [vmem:[%s194 + $0xe0] sm:$0xff]
        %v273 = vld [vmem:[%s194 + $0xe8] sm:$0xff]
        %v274 = vld [vmem:[%s194 + $0xf0] sm:$0xff]
        %v275 = vld [vmem:[%s194 + $0xf8] sm:$0xff]
        %v276 = vld [vmem:[%s231] sm:$0xff]
        %v277 = vld [vmem:[%s231 + $0x8] sm:$0xff]
        %v278 = vld [vmem:[%s231 + $0x10] sm:$0xff]
        %v279 = vld [vmem:[%s231 + $0x18] sm:$0xff]
        %v280 = vld [vmem:[%s231 + $0x20] sm:$0xff]
        %v281 = vld [vmem:[%s231 + $0x28] sm:$0xff]
        %v282 = vld [vmem:[%s231 + $0x30] sm:$0xff]
        %v283 = vld [vmem:[%s231 + $0x38] sm:$0xff]
        %v284 = vld [vmem:[%s231 + $0x40] sm:$0xff]
        %v285 = vld [vmem:[%s231 + $0x48] sm:$0xff]
        %v286 = vld [vmem:[%s231 + $0x50] sm:$0xff]
        %v287 = vld [vmem:[%s231 + $0x58] sm:$0xff]
        %v288 = vld [vmem:[%s231 + $0x60] sm:$0xff]
        %v289 = vld [vmem:[%s231 + $0x68] sm:$0xff]
        %v290 = vld [vmem:[%s231 + $0x70] sm:$0xff]
        %v291 = vld [vmem:[%s231 + $0x78] sm:$0xff]
        %v292 = vld [vmem:[%s234] sm:$0x1]
        %v294 = vlaneseq
        %v295 = vshrl.u32 %v294, 7
        %v296 = vsub.s32 0, %v295
        %v297 = vrot.slane %v292, %v296
        %299 = vmatprep.subr.mxu0 0.0
        %300 = vmatpush1.msra.mxu0 %v291
        %301 = vmatprep.subr.mxu0 0.0
        %302 = vmatpush1.msra.mxu0 %v290
        %303 = vmatprep.subr.mxu0 0.0
        %304 = vmatpush1.msra.mxu0 %v289
        %305 = vmatprep.subr.mxu0 0.0
        %306 = vmatpush1.msra.mxu0 %v288
        %307 = vmatprep.subr.mxu0 0.0
        %308 = vmatpush1.msra.mxu0 %v287
        %309 = vmatprep.subr.mxu0 0.0
        %310 = vmatpush1.msra.mxu0 %v286
        %311 = vmatprep.subr.mxu0 0.0
        %312 = vmatpush1.msra.mxu0 %v285
        %313 = vmatprep.subr.mxu0 0.0
        %314 = vmatpush1.msra.mxu0 %v284
        %315 = vmatprep.subr.mxu0 0.0
        %316 = vmatpush1.msra.mxu0 %v283
        %317 = vmatprep.subr.mxu0 0.0
        %318 = vmatpush1.msra.mxu0 %v282
        %319 = vmatprep.subr.mxu0 0.0
        %320 = vmatpush1.msra.mxu0 %v281
        %321 = vmatprep.subr.mxu0 0.0
        %322 = vmatpush1.msra.mxu0 %v280
        %323 = vmatprep.subr.mxu0 0.0
        %324 = vmatpush1.msra.mxu0 %v279
        %325 = vmatprep.subr.mxu0 0.0
        %326 = vmatpush1.msra.mxu0 %v278
        %327 = vmatprep.subr.mxu0 0.0
        %328 = vmatpush1.msra.mxu0 %v277
        %329 = vmatprep.subr.mxu0 0.0
        %330 = vmatpush1.msra.mxu0 %v276
        %331 = vmatprep.subr.mxu0 0.0
        %332 = vmatpush2.msra.mxu0 0.0
        %333 = vmatprep.subr.mxu0 0.0
        %334 = vmatpush2.msra.mxu0 0.0
        %335 = vmatprep.subr.mxu0 0.0
        %336 = vmatpush2.msra.mxu0 0.0
        %337 = vmatprep.subr.mxu0 0.0
        %338 = vmatpush2.msra.mxu0 0.0
        %339 = vmatprep.subr.mxu0 0.0
        %340 = vmatpush2.msra.mxu0 0.0
        %341 = vmatprep.subr.mxu0 0.0
        %342 = vmatpush2.msra.mxu0 0.0
        %343 = vmatprep.subr.mxu0 0.0
        %344 = vmatpush2.msra.mxu0 0.0
        %345 = vmatprep.subr.mxu0 0.0
        %346 = vmatpush2.msra.mxu0 0.0
        %347 = vmatprep.subr.mxu0 0.0
        %348 = vmatpush2.msra.mxu0 0.0
        %349 = vmatprep.subr.mxu0 0.0
        %350 = vmatpush2.msra.mxu0 0.0
        %351 = vmatprep.subr.mxu0 0.0
        %352 = vmatpush2.msra.mxu0 0.0
        %353 = vmatprep.subr.mxu0 0.0
        %354 = vmatpush2.msra.mxu0 0.0
        %355 = vmatprep.subr.mxu0 0.0
        %356 = vmatpush2.msra.mxu0 0.0
        %357 = vmatprep.subr.mxu0 0.0
        %358 = vmatpush2.msra.mxu0 0.0
        %359 = vmatprep.subr.mxu0 0.0
        %360 = vmatpush2.msra.mxu0 0.0
        %361 = vmatprep.subr.mxu0 0.0
        %362 = vmatpush2.msra.mxu0 0.0
        %363 = vmatprep.mubr.f32.mxu0 0.0
        %364 = vmatmul.mubr.f32.gmra.mxu0 %v244
        %v365 = vpop.f32.mrf.mxu0
        %v366 = vadd.f32 %v297, %v365
        %v367 = vpop.f32.mrf.mxu0
        %368 = vmatprep.mubr.f32.mxu0 0.0
        %369 = vmatmul.mubr.f32.gmra.mxu0 %v245
        %v370 = vpop.f32.mrf.mxu0
        %v371 = vadd.f32 %v297, %v370
        %v372 = vpop.f32.mrf.mxu0
        %373 = vmatprep.mubr.f32.mxu0 0.0
        %374 = vmatmul.mubr.f32.gmra.mxu0 %v246
        %v375 = vpop.f32.mrf.mxu0
        %v376 = vadd.f32 %v297, %v375
        %v377 = vpop.f32.mrf.mxu0
        %378 = vmatprep.mubr.f32.mxu0 0.0
        %379 = vmatmul.mubr.f32.gmra.mxu0 %v247
        %v380 = vpop.f32.mrf.mxu0
        %v381 = vadd.f32 %v297, %v380
        %v382 = vpop.f32.mrf.mxu0
        %383 = vmatprep.mubr.f32.mxu0 0.0
        %384 = vmatmul.mubr.f32.gmra.mxu0 %v248
        %v385 = vpop.f32.mrf.mxu0
        %v386 = vadd.f32 %v297, %v385
        %v387 = vpop.f32.mrf.mxu0
        %388 = vmatprep.mubr.f32.mxu0 0.0
        %389 = vmatmul.mubr.f32.gmra.mxu0 %v249
        %v390 = vpop.f32.mrf.mxu0
        %v391 = vadd.f32 %v297, %v390
        %v392 = vpop.f32.mrf.mxu0
        %393 = vmatprep.mubr.f32.mxu0 0.0
        %394 = vmatmul.mubr.f32.gmra.mxu0 %v250
        %v395 = vpop.f32.mrf.mxu0
        %v396 = vadd.f32 %v297, %v395
        %v397 = vpop.f32.mrf.mxu0
        %398 = vmatprep.mubr.f32.mxu0 0.0
        %399 = vmatmul.mubr.f32.gmra.mxu0 %v251
        %v400 = vpop.f32.mrf.mxu0
        %v401 = vadd.f32 %v297, %v400
        %v402 = vpop.f32.mrf.mxu0
        %403 = vmatprep.mubr.f32.mxu0 0.0
        %404 = vmatmul.mubr.f32.gmra.mxu0 %v252
        %v405 = vpop.f32.mrf.mxu0
        %v406 = vadd.f32 %v297, %v405
        %v407 = vpop.f32.mrf.mxu0
        %408 = vmatprep.mubr.f32.mxu0 0.0
        %409 = vmatmul.mubr.f32.gmra.mxu0 %v253
        %v410 = vpop.f32.mrf.mxu0
        %v411 = vadd.f32 %v297, %v410
        %v412 = vpop.f32.mrf.mxu0
        %413 = vmatprep.mubr.f32.mxu0 0.0
        %414 = vmatmul.mubr.f32.gmra.mxu0 %v254
        %v415 = vpop.f32.mrf.mxu0
        %v416 = vadd.f32 %v297, %v415
        %v417 = vpop.f32.mrf.mxu0
        %418 = vmatprep.mubr.f32.mxu0 0.0
        %419 = vmatmul.mubr.f32.gmra.mxu0 %v255
        %v420 = vpop.f32.mrf.mxu0
        %v421 = vadd.f32 %v297, %v420
        %v422 = vpop.f32.mrf.mxu0
        %423 = vmatprep.mubr.f32.mxu0 0.0
        %424 = vmatmul.mubr.f32.gmra.mxu0 %v256
        %v425 = vpop.f32.mrf.mxu0
        %v426 = vadd.f32 %v297, %v425
        %v427 = vpop.f32.mrf.mxu0
        %428 = vmatprep.mubr.f32.mxu0 0.0
        %429 = vmatmul.mubr.f32.gmra.mxu0 %v257
        %v430 = vpop.f32.mrf.mxu0
        %v431 = vadd.f32 %v297, %v430
        %v432 = vpop.f32.mrf.mxu0
        %433 = vmatprep.mubr.f32.mxu0 0.0
        %434 = vmatmul.mubr.f32.gmra.mxu0 %v258
        %v435 = vpop.f32.mrf.mxu0
        %v436 = vadd.f32 %v297, %v435
        %v437 = vpop.f32.mrf.mxu0
        %438 = vmatprep.mubr.f32.mxu0 0.0
        %439 = vmatmul.mubr.f32.gmra.mxu0 %v259
        %v440 = vpop.f32.mrf.mxu0
        %v441 = vadd.f32 %v297, %v440
        %v442 = vpop.f32.mrf.mxu0
        %443 = vmatprep.mubr.f32.mxu0 0.0
        %444 = vmatmul.mubr.f32.gmra.mxu0 %v260
        %v445 = vpop.f32.mrf.mxu0
        %v446 = vadd.f32 %v297, %v445
        %v447 = vpop.f32.mrf.mxu0
        %448 = vmatprep.mubr.f32.mxu0 0.0
        %449 = vmatmul.mubr.f32.gmra.mxu0 %v261
        %v450 = vpop.f32.mrf.mxu0
        %v451 = vadd.f32 %v297, %v450
        %v452 = vpop.f32.mrf.mxu0
        %453 = vmatprep.mubr.f32.mxu0 0.0
        %454 = vmatmul.mubr.f32.gmra.mxu0 %v262
        %v455 = vpop.f32.mrf.mxu0
        %v456 = vadd.f32 %v297, %v455
        %v457 = vpop.f32.mrf.mxu0
        %458 = vmatprep.mubr.f32.mxu0 0.0
        %459 = vmatmul.mubr.f32.gmra.mxu0 %v263
        %v460 = vpop.f32.mrf.mxu0
        %v461 = vadd.f32 %v297, %v460
        %v462 = vpop.f32.mrf.mxu0
        %463 = vmatprep.mubr.f32.mxu0 0.0
        %464 = vmatmul.mubr.f32.gmra.mxu0 %v264
        %v465 = vpop.f32.mrf.mxu0
        %v466 = vadd.f32 %v297, %v465
        %v467 = vpop.f32.mrf.mxu0
        %468 = vmatprep.mubr.f32.mxu0 0.0
        %469 = vmatmul.mubr.f32.gmra.mxu0 %v265
        %v470 = vpop.f32.mrf.mxu0
        %v471 = vadd.f32 %v297, %v470
        %v472 = vpop.f32.mrf.mxu0
        %473 = vmatprep.mubr.f32.mxu0 0.0
        %474 = vmatmul.mubr.f32.gmra.mxu0 %v266
        %v475 = vpop.f32.mrf.mxu0
        %v476 = vadd.f32 %v297, %v475
        %v477 = vpop.f32.mrf.mxu0
        %478 = vmatprep.mubr.f32.mxu0 0.0
        %479 = vmatmul.mubr.f32.gmra.mxu0 %v267
        %v480 = vpop.f32.mrf.mxu0
        %v481 = vadd.f32 %v297, %v480
        %v482 = vpop.f32.mrf.mxu0
        %483 = vmatprep.mubr.f32.mxu0 0.0
        %484 = vmatmul.mubr.f32.gmra.mxu0 %v268
        %v485 = vpop.f32.mrf.mxu0
        %v486 = vadd.f32 %v297, %v485
        %v487 = vpop.f32.mrf.mxu0
        %488 = vmatprep.mubr.f32.mxu0 0.0
        %489 = vmatmul.mubr.f32.gmra.mxu0 %v269
        %v490 = vpop.f32.mrf.mxu0
        %v491 = vadd.f32 %v297, %v490
        %v492 = vpop.f32.mrf.mxu0
        %493 = vmatprep.mubr.f32.mxu0 0.0
        %494 = vmatmul.mubr.f32.gmra.mxu0 %v270
        %v495 = vpop.f32.mrf.mxu0
        %v496 = vadd.f32 %v297, %v495
        %v497 = vpop.f32.mrf.mxu0
        %498 = vmatprep.mubr.f32.mxu0 0.0
        %499 = vmatmul.mubr.f32.gmra.mxu0 %v271
        %v500 = vpop.f32.mrf.mxu0
        %v501 = vadd.f32 %v297, %v500
        %v502 = vpop.f32.mrf.mxu0
        %503 = vmatprep.mubr.f32.mxu0 0.0
        %504 = vmatmul.mubr.f32.gmra.mxu0 %v272
        %v505 = vpop.f32.mrf.mxu0
        %v506 = vadd.f32 %v297, %v505
        %v507 = vpop.f32.mrf.mxu0
        %508 = vmatprep.mubr.f32.mxu0 0.0
        %509 = vmatmul.mubr.f32.gmra.mxu0 %v273
        %v510 = vpop.f32.mrf.mxu0
        %v511 = vadd.f32 %v297, %v510
        %v512 = vpop.f32.mrf.mxu0
        %513 = vmatprep.mubr.f32.mxu0 0.0
        %514 = vmatmul.mubr.f32.gmra.mxu0 %v274
        %v515 = vpop.f32.mrf.mxu0
        %v516 = vadd.f32 %v297, %v515
        %v517 = vpop.f32.mrf.mxu0
        %518 = vmatprep.mubr.f32.mxu0 0.0
        %519 = vmatmul.mubr.f32.gmra.mxu0 %v275
        %v520 = vpop.f32.mrf.mxu0
        %v521 = vadd.f32 %v297, %v520
        %v522 = vpop.f32.mrf.mxu0
        %523 = vdwg.mxu0
        %v524 = vmax.f32 %v366, 0.0
        %v525 = vmax.f32 %v371, 0.0
        %v526 = vmax.f32 %v376, 0.0
        %v527 = vmax.f32 %v381, 0.0
        %v528 = vmax.f32 %v386, 0.0
        %v529 = vmax.f32 %v391, 0.0
        %v530 = vmax.f32 %v396, 0.0
        %v531 = vmax.f32 %v401, 0.0
        %v532 = vmax.f32 %v406, 0.0
        %v533 = vmax.f32 %v411, 0.0
        %v534 = vmax.f32 %v416, 0.0
        %v535 = vmax.f32 %v421, 0.0
        %v536 = vmax.f32 %v426, 0.0
        %v537 = vmax.f32 %v431, 0.0
        %v538 = vmax.f32 %v436, 0.0
        %v539 = vmax.f32 %v441, 0.0
        %v540 = vmax.f32 %v446, 0.0
        %v541 = vmax.f32 %v451, 0.0
        %v542 = vmax.f32 %v456, 0.0
        %v543 = vmax.f32 %v461, 0.0
        %v544 = vmax.f32 %v466, 0.0
        %v545 = vmax.f32 %v471, 0.0
        %v546 = vmax.f32 %v476, 0.0
        %v547 = vmax.f32 %v481, 0.0
        %v548 = vmax.f32 %v486, 0.0
        %v549 = vmax.f32 %v491, 0.0
        %v550 = vmax.f32 %v496, 0.0
        %v551 = vmax.f32 %v501, 0.0
        %v552 = vmax.f32 %v506, 0.0
        %v553 = vmax.f32 %v511, 0.0
        %v554 = vmax.f32 %v516, 0.0
        %v555 = vmax.f32 %v521, 0.0
        %556 = vst [vmem:[%s242] sm:$0xff] %v524
        %557 = vst [vmem:[%s242 + $0x8] sm:$0xff] %v525
        %558 = vst [vmem:[%s242 + $0x10] sm:$0xff] %v526
        %559 = vst [vmem:[%s242 + $0x18] sm:$0xff] %v527
        %560 = vst [vmem:[%s242 + $0x20] sm:$0xff] %v528
        %561 = vst [vmem:[%s242 + $0x28] sm:$0xff] %v529
        %562 = vst [vmem:[%s242 + $0x30] sm:$0xff] %v530
        %563 = vst [vmem:[%s242 + $0x38] sm:$0xff] %v531
        %564 = vst [vmem:[%s242 + $0x40] sm:$0xff] %v532
        %565 = vst [vmem:[%s242 + $0x48] sm:$0xff] %v533
        %566 = vst [vmem:[%s242 + $0x50] sm:$0xff] %v534
        %567 = vst [vmem:[%s242 + $0x58] sm:$0xff] %v535
        %568 = vst [vmem:[%s242 + $0x60] sm:$0xff] %v536
        %569 = vst [vmem:[%s242 + $0x68] sm:$0xff] %v537
        %570 = vst [vmem:[%s242 + $0x70] sm:$0xff] %v538
        %571 = vst [vmem:[%s242 + $0x78] sm:$0xff] %v539
        %572 = vst [vmem:[%s242 + $0x80] sm:$0xff] %v540
        %573 = vst [vmem:[%s242 + $0x88] sm:$0xff] %v541
        %574 = vst [vmem:[%s242 + $0x90] sm:$0xff] %v542
        %575 = vst [vmem:[%s242 + $0x98] sm:$0xff] %v543
        %576 = vst [vmem:[%s242 + $0xa0] sm:$0xff] %v544
        %577 = vst [vmem:[%s242 + $0xa8] sm:$0xff] %v545
        %578 = vst [vmem:[%s242 + $0xb0] sm:$0xff] %v546
        %579 = vst [vmem:[%s242 + $0xb8] sm:$0xff] %v547
        %580 = vst [vmem:[%s242 + $0xc0] sm:$0xff] %v548
        %581 = vst [vmem:[%s242 + $0xc8] sm:$0xff] %v549
        %582 = vst [vmem:[%s242 + $0xd0] sm:$0xff] %v550
        %583 = vst [vmem:[%s242 + $0xd8] sm:$0xff] %v551
        %584 = vst [vmem:[%s242 + $0xe0] sm:$0xff] %v552
        %585 = vst [vmem:[%s242 + $0xe8] sm:$0xff] %v553
        %586 = vst [vmem:[%s242 + $0xf0] sm:$0xff] %v554
        %587 = vst [vmem:[%s242 + $0xf8] sm:$0xff] %v555
        %s588 = smul.u32 32, %s22
        %p589 = scmp.lt.s32.totalorder %s588, 63
        %s590 = scalar_select %p589, %s588, 63
        %p591 = scmp.lt.s32.totalorder %s21, 0
        %s592 = scalar_select %p591, %s21, 0
        %s593 = sadd.s32 %s592, %s590
        %s594 = smul.addr %s593, 8
        %s595 = scalar_lea.vmem %s3, %s594
        // Predicated region
        $region37: #{_node_apply_impl.1} parent=31 // pred_check
          %p596 = pneg %p127
        $region38: #{_node_apply_impl.1} parent=31 // pred_check_branch
          %598 = sbr.rel (%p596) target = $region40
        $region39: #{_node_apply_impl.1} parent=31 // pred_region
          %s599 = smul.u32 32, %s22
        $region40: #{_node_apply_impl.1} parent=31 // pred_fallthru
          _
      $region32: #{_node_apply_impl.1} parent=5 // pred_fallthru
        _
      %p600 = scmp.le.s32.totalorder 2, %s12
      // Predicated region
      $region41: #{_node_apply_impl.1} parent=5 // pred_check
        %p601 = pneg %p600
      $region42: #{_node_apply_impl.1} parent=5 // pred_check_branch
        %603 = sbr.rel (%p601) target = $region44
      $region43: #{_node_apply_impl.1} parent=5 // pred_region
        %s604 = ssub.s32 %s12, 2
        // Predicated region
        $region45: #{_node_apply_impl.1} parent=43 // pred_check
          %p605 = pneg %p133
        $region46: #{_node_apply_impl.1} parent=43 // pred_check_branch
          %607 = sbr.rel (%p605) target = $region48
        $region47: #{_node_apply_impl.1} parent=43 // pred_region
          %s608 = smul.u32 32, %s24
          %p609 = scmp.lt.s32.totalorder %s608, 63
          %s610 = scalar_select %p609, %s608, 63
          %p611 = scmp.lt.s32.totalorder %s23, 0
          %s612 = scalar_select %p611, %s23, 0
          %s613 = sadd.s32 %s612, %s610
          %s614 = smul.addr %s613, 8
          %s615 = scalar_lea.vmem %s3, %s614
        $region48: #{_node_apply_impl.1} parent=43 // pred_fallthru
          _
      $region44: #{_node_apply_impl.1} parent=5 // pred_fallthru
        _
    $region6: #{_node_apply_impl.1} parent=1 // loop_footer
      %s16 = sadd.s32 1, %s12
    $region7: #{_node_apply_impl.1} parent=1 // loop_footer_branch
      %11 = sbr.rel target = $region3
    $region8: #{_node_apply_impl.1} parent=1 // loop_exit
      _
    %616 = vsyncpa [#allocation3], 1
    %s617 = scalar_lea.sflag [#allocation3], 1
    %618 = vsyncpa %s617, 1

// kernel: _node_apply_impl.1
$region0: #{_node_apply_impl.1}
  #allocation0 [shape = 'u32[]', space=smem, size = 0x4, offset = 0x4, fixed_abs, tag = 'smem constant byte address 0x4 - core index']
  #allocation1 [shape = 'u32[144,128]{1,0:T(1,128)}', space=vmem, size = 0x12000, scoped, tag = 'internal scratch']
  %s0 = inlined_call_operand.hbm [shape: f32[512,128], index: 0, kind: input, shape index: {}]
  %s1 = inlined_call_operand.vmem [shape: f32[128,128], index: 1, kind: input, shape index: {}]
  %s2 = inlined_call_operand.vmem [shape: f32[1,128], index: 2, kind: input, shape index: {}]
  %s3 = inlined_call_operand.vmem [shape: f32[512,128], index: 3, kind: output, shape index: {}]
  %s4 = sld [smem:[#allocation0]]
  $region49: #{_node_apply_impl.1} parent=0
    _
  %s6 = ssub.s32 1, %s4
  %s7 = scalar_select 0, %s6, %s4
  $region1: #{_node_apply_impl.1} parent=0
    #allocation2 [shape = 'u8[262144]{0}', space=vmem, size = 0x40000, scoped, tag = 'input window, operand 0']
    #allocation3 [shape = 's32[2]{0}', space=sflag, size = 0x8, scoped, tag = 'scoped memory for _node_apply_impl.1']
    %8 = vsyncpa [#allocation3], 0
    %s9 = scalar_lea.sflag [#allocation3], 1
    %10 = vsyncpa %s9, 0
    loop: start=0, step=1, limit=4
    $region2: #{_node_apply_impl.1} parent=1 // loop_pre_header
      _
    $region3: #{_node_apply_impl.1} parent=1 // loop_header
      %s12 = sphi 0, %s16
      %p13 = scmp.ge.s32.totalorder %s12, 4
      %s19 = sphi 0, %s31
      %s20 = sphi 0, %s27
      %s21 = sphi 0, %s19
      %s22 = sphi 0, %s20
      %s23 = sphi 0, %s21
      %s24 = sphi 0, %s22
      %s34 = sphi 0, %s36
      %s37 = sphi 0, %s34
      %s38 = sphi 0, %s37
      %s54 = sphi 0, %s38
      %s60 = sphi 0, %s62
      %s63 = sphi 0, %s60
      %s64 = sphi 0, %s63
      %s80 = sphi 0, %s64
      %s86 = sphi 0, %s88
      %s89 = sphi 0, %s86
      %s90 = sphi 0, %s89
      %s106 = sphi 0, %s90
      %s114 = sphi 0, %s116
      %s117 = sphi 0, %s114
      %s118 = sphi 0, %s117
      %s134 = sphi 0, %s118
    $region4: #{_node_apply_impl.1} parent=1 // loop_header_branch
      %15 = sbr.rel (%p13) target = $region8
    $region5: #{_node_apply_impl.1} parent=1 // loop_body
      %s17 = ssub.s32 %s12, 1
      %s18 = ssub.s32 %s12, 2
      %s25 = sadd.s32 1, %s20
      %p26 = scmp.ge.s32.totalorder %s25, 2
      %s27 = scalar_select %p26, 0, %s25
      %s28 = sadd.s32 1, %s19
      %s29 = scalar_select %p26, %s28, %s19
      %p30 = scmp.ge.s32.totalorder %s29, 1
      %s31 = scalar_select %p30, 0, %s29
      %s32 = ssub.s32 %s20, %s27
      %p33 = scmp.eq.s32.totalorder %s32, 0
      %s35 = sadd.s32 %s34, 1
      %s36 = scalar_select %p33, %s34, %s35
      %p39 = pneg %p33
      %p40 = scmp.eq.s32.totalorder %s12, 1
      %p41 = por %p39, %p40
      %p42 = scmp.ne.s32.totalorder %s34, %s37
      %p43 = scmp.eq.s32.totalorder %s12, 0
      %p44 = por %p42, %p43
      %p45 = scmp.ne.s32.totalorder %s34, %s37
      %p46 = scmp.eq.s32.totalorder %s17, 1
      %p47 = por %p45, %p46
      %p48 = scmp.ne.s32.totalorder %s37, %s38
      %p49 = scmp.eq.s32.totalorder %s17, 0
      %p50 = por %p48, %p49
      %p51 = scmp.ne.s32.totalorder %s37, %s38
      %p52 = scmp.eq.s32.totalorder %s18, 1
      %p53 = por %p51, %p52
      %p55 = scmp.ne.s32.totalorder %s38, %s54
      %p56 = scmp.eq.s32.totalorder %s18, 0
      %p57 = por %p55, %p56
      %s58 = ssub.s32 %s19, %s31
      %p59 = scmp.eq.s32.totalorder %s58, 0
      %s61 = sadd.s32 %s60, 1
      %s62 = scalar_select %p59, %s60, %s61
      %p65 = pneg %p59
      %p66 = scmp.eq.s32.totalorder %s12, 1
      %p67 = por %p65, %p66
      %p68 = scmp.ne.s32.totalorder %s60, %s63
      %p69 = scmp.eq.s32.totalorder %s12, 0
      %p70 = por %p68, %p69
      %p71 = scmp.ne.s32.totalorder %s60, %s63
      %p72 = scmp.eq.s32.totalorder %s17, 1
      %p73 = por %p71, %p72
      %p74 = scmp.ne.s32.totalorder %s63, %s64
      %p75 = scmp.eq.s32.totalorder %s17, 0
      %p76 = por %p74, %p75
      %p77 = scmp.ne.s32.totalorder %s63, %s64
      %p78 = scmp.eq.s32.totalorder %s18, 1
      %p79 = por %p77, %p78
      %p81 = scmp.ne.s32.totalorder %s64, %s80
      %p82 = scmp.eq.s32.totalorder %s18, 0
      %p83 = por %p81, %p82
      %s84 = ssub.s32 %s19, %s31
      %p85 = scmp.eq.s32.totalorder %s84, 0
      %s87 = sadd.s32 %s86, 1
      %s88 = scalar_select %p85, %s86, %s87
      %p91 = pneg %p85
      %p92 = scmp.eq.s32.totalorder %s12, 1
      %p93 = por %p91, %p92
      %p94 = scmp.ne.s32.totalorder %s86, %s89
      %p95 = scmp.eq.s32.totalorder %s12, 0
      %p96 = por %p94, %p95
      %p97 = scmp.ne.s32.totalorder %s86, %s89
      %p98 = scmp.eq.s32.totalorder %s17, 1
      %p99 = por %p97, %p98
      %p100 = scmp.ne.s32.totalorder %s89, %s90
      %p101 = scmp.eq.s32.totalorder %s17, 0
      %p102 = por %p100, %p101
      %p103 = scmp.ne.s32.totalorder %s89, %s90
      %p104 = scmp.eq.s32.totalorder %s18, 1
      %p105 = por %p103, %p104
      %p107 = scmp.ne.s32.totalorder %s90, %s106
      %p108 = scmp.eq.s32.totalorder %s18, 0
      %p109 = por %p107, %p108
      %s110 = ssub.s32 %s20, %s27
      %s111 = ssub.s32 %s19, %s31
      %s112 = sor.u32 %s110, %s111
      %p113 = scmp.eq.s32.totalorder %s112, 0
      %s115 = sadd.s32 %s114, 1
      %s116 = scalar_select %p113, %s114, %s115
      %p119 = pneg %p113
      %p120 = scmp.eq.s32.totalorder %s12, 1
      %p121 = por %p119, %p120
      %p122 = scmp.ne.s32.totalorder %s114, %s117
      %p123 = scmp.eq.s32.totalorder %s12, 0
      %p124 = por %p122, %p123
      %p125 = scmp.ne.s32.totalorder %s114, %s117
      %p126 = scmp.eq.s32.totalorder %s17, 1
      %p127 = por %p125, %p126
      %p128 = scmp.ne.s32.totalorder %s117, %s118
      %p129 = scmp.eq.s32.totalorder %s17, 0
      %p130 = por %p128, %p129
      %p131 = scmp.ne.s32.totalorder %s117, %s118
      %p132 = scmp.eq.s32.totalorder %s18, 1
      %p133 = por %p131, %p132
      %p135 = scmp.ne.s32.totalorder %s118, %s134
      %p136 = scmp.eq.s32.totalorder %s18, 0
      %p137 = por %p135, %p136
      %p138 = scmp.le.s32.totalorder 1, %s12
      %p139 = scmp.lt.s32.totalorder %s12, 3
      %p140 = pnand %p138, %p139
      %p141 = pneg %p140
      // Predicated region
      $region9: #{_node_apply_impl.1} parent=5 // pred_check
        _
      $region10: #{_node_apply_impl.1} parent=5 // pred_check_branch
        %143 = sbr.rel (%p140) target = $region12
      $region11: #{_node_apply_impl.1} parent=5 // pred_region
        %s144 = ssub.s32 %s12, 1
        // Predicated region
        $region13: #{_node_apply_impl.1} parent=11 // pred_check
          %p145 = pneg %p76
        $region14: #{_node_apply_impl.1} parent=11 // pred_check_branch
          %147 = sbr.rel (%p145) target = $region16
        $region15: #{_node_apply_impl.1} parent=11 // pred_region
          %p148 = scmp.lt.s32.totalorder %s21, 0
          %s149 = scalar_select %p148, %s21, 0
          %s150 = smul.addr %s149, 8
          %s151 = scalar_lea.vmem %s1, %s150
        $region16: #{_node_apply_impl.1} parent=11 // pred_fallthru
          _
        // Predicated region
        $region17: #{_node_apply_impl.1} parent=11 // pred_check
          %p152 = pneg %p102
        $region18: #{_node_apply_impl.1} parent=11 // pred_check_branch
          %154 = sbr.rel (%p152) target = $region20
        $region19: #{_node_apply_impl.1} parent=11 // pred_region
          %p155 = scmp.lt.s32.totalorder %s21, 0
          %s156 = scalar_select %p155, %s21, 0
          %s157 = scalar_lea.vmem %s2, %s156
        $region20: #{_node_apply_impl.1} parent=11 // pred_fallthru
          _
      $region12: #{_node_apply_impl.1} parent=5 // pred_fallthru
        _
      %p158 = scmp.lt.s32.totalorder %s12, 2
      // Predicated region
      $region21: #{_node_apply_impl.1} parent=5 // pred_check
        %p159 = pneg %p158
      $region22: #{_node_apply_impl.1} parent=5 // pred_check_branch
        %161 = sbr.rel (%p159) target = $region24
      $region23: #{_node_apply_impl.1} parent=5 // pred_region
        // Predicated region
        $region25: #{_node_apply_impl.1} parent=23 // pred_check
          %p162 = pneg %p44
        $region26: #{_node_apply_impl.1} parent=23 // pred_check_branch
          %164 = sbr.rel (%p162) target = $region28
        $region27: #{_node_apply_impl.1} parent=23 // pred_region
          %s165 = sand.u32 %s34, 1
          %s166 = scalar_lea.sflag [#allocation3], %s165
          %s167 = sand.u32 %s34, 1
          %s168 = smul.addr %s167, 256
          %s169 = scalar_lea.vmem [#allocation2], %s168
          %s170 = smul.u32 32, %s20
          %s172 = ssub.s32 4096, 4096
          %173 = vsyncadd %s166, %s172
          %s174 = smul.addr %s170, 128
          %s175 = scalar_lea.hbm %s0, %s174
          %s176 = sshll.u32 %s169, 4
          %s177 = int_to_ptr.vmem [resolvable:$true] %s176
          %182 = dma.hbm_to_vmem [thread:$0]  %s175, 4096, %s177, %s166, 128, 128, 8
        $region28: #{_node_apply_impl.1} parent=23 // pred_fallthru
          _
      $region24: #{_node_apply_impl.1} parent=5 // pred_fallthru
        _
      %p183 = scmp.le.s32.totalorder 1, %s12
      %p184 = scmp.lt.s32.totalorder %s12, 3
      %p185 = pnand %p183, %p184
      %p186 = pneg %p185
      // Predicated region
      $region29: #{_node_apply_impl.1} parent=5 // pred_check
        _
      $region30: #{_node_apply_impl.1} parent=5 // pred_check_branch
        %188 = sbr.rel (%p185) target = $region32
      $region31: #{_node_apply_impl.1} parent=5 // pred_region
        %s189 = ssub.s32 %s12, 1
        %s190 = sand.u32 %s37, 1
        %s191 = scalar_lea.sflag [#allocation3], %s190
        %s192 = sand.u32 %s37, 1
        %s193 = smul.addr %s192, 256
        %s194 = scalar_lea.vmem [#allocation2], %s193
        // Predicated region
        $region33: #{_node_apply_impl.1} parent=31 // pred_check
          %p195 = pneg %p50
        $region34: #{_node_apply_impl.1} parent=31 // pred_check_branch
          %197 = sbr.rel (%p195) target = $region36
        $region35: #{_node_apply_impl.1} parent=31 // pred_region
          %198 = dma.done %s191, 4096
        $region36: #{_node_apply_impl.1} parent=31 // pred_fallthru
          _
        %s199 = sand.u32 %s37, 1
        %s200 = scalar_lea.sflag [#allocation3], %s199
        %s201 = sand.u32 %s37, 1
        %s202 = smul.addr %s201, 256
        %s203 = scalar_lea.vmem [#allocation2], %s202
        %p204 = pneg %p50
        %p205 = pneg %p47
        %p206 = scmp.lt.s32.totalorder %s21, 0
        %s207 = scalar_select %p206, %s21, 0
        %s208 = smul.addr %s207, 8
        %s209 = scalar_lea.vmem %s1, %s208
        %p210 = pneg %p76
        %p211 = pneg %p73
        %p212 = scmp.lt.s32.totalorder %s21, 0
        %s213 = scalar_select %p212, %s21, 0
        %s214 = scalar_lea.vmem %s2, %s213
        %p215 = pneg %p102
        %p216 = pneg %p99
        %p217 = pneg %p130
        %p218 = pneg %p127
        %s219 = smul.u32 32, %s22
        %p220 = scmp.lt.s32.totalorder %s219, 63
        %s221 = scalar_select %p220, %s219, 63
        %p222 = scmp.lt.s32.totalorder %s21, 0
        %s223 = scalar_select %p222, %s21, 0
        %s224 = sadd.s32 %s223, %s221
        %s225 = smul.addr %s224, 8
        %s226 = scalar_lea.vmem %s3, %s225
        %s227 = smul.u32 32, %s22
        %p228 = scmp.lt.s32.totalorder %s21, 0
        %s229 = scalar_select %p228, %s21, 0
        %s230 = smul.addr %s229, 8
        %s231 = scalar_lea.vmem %s1, %s230
        %p232 = scmp.lt.s32.totalorder %s21, 0
        %s233 = scalar_select %p232, %s21, 0
        %s234 = scalar_lea.vmem %s2, %s233
        %s235 = smul.u32 32, %s22
        %p236 = scmp.lt.s32.totalorder %s235, 63
        %s237 = scalar_select %p236, %s235, 63
        %p238 = scmp.lt.s32.totalorder %s21, 0
        %s239 = scalar_select %p238, %s21, 0
        %s240 = sadd.s32 %s239, %s237
        %s241 = smul.addr %s240, 8
        %s242 = scalar_lea.vmem %s3, %s241
        %s243 = smul.u32 32, %s22
        %v244 = vld [vmem:[%s194] sm:$0xff]
        %v245 = vld [vmem:[%s194 + $0x8] sm:$0xff]
        %v246 = vld [vmem:[%s194 + $0x10] sm:$0xff]
        %v247 = vld [vmem:[%s194 + $0x18] sm:$0xff]
        %v248 = vld [vmem:[%s194 + $0x20] sm:$0xff]
        %v249 = vld [vmem:[%s194 + $0x28] sm:$0xff]
        %v250 = vld [vmem:[%s194 + $0x30] sm:$0xff]
        %v251 = vld [vmem:[%s194 + $0x38] sm:$0xff]
        %v252 = vld [vmem:[%s194 + $0x40] sm:$0xff]
        %v253 = vld [vmem:[%s194 + $0x48] sm:$0xff]
        %v254 = vld [vmem:[%s194 + $0x50] sm:$0xff]
        %v255 = vld [vmem:[%s194 + $0x58] sm:$0xff]
        %v256 = vld [vmem:[%s194 + $0x60] sm:$0xff]
        %v257 = vld [vmem:[%s194 + $0x68] sm:$0xff]
        %v258 = vld [vmem:[%s194 + $0x70] sm:$0xff]
        %v259 = vld [vmem:[%s194 + $0x78] sm:$0xff]
        %v260 = vld [vmem:[%s194 + $0x80] sm:$0xff]
        %v261 = vld [vmem:[%s194 + $0x88] sm:$0xff]
        %v262 = vld [vmem:[%s194 + $0x90] sm:$0xff]
        %v263 = vld [vmem:[%s194 + $0x98] sm:$0xff]
        %v264 = vld [vmem:[%s194 + $0xa0] sm:$0xff]
        %v265 = vld [vmem:[%s194 + $0xa8] sm:$0xff]
        %v266 = vld [vmem:[%s194 + $0xb0] sm:$0xff]
        %v267 = vld [vmem:[%s194 + $0xb8] sm:$0xff]
        %v268 = vld [vmem:[%s194 + $0xc0] sm:$0xff]
        %v269 = vld [vmem:[%s194 + $0xc8] sm:$0xff]
        %v270 = vld [vmem:[%s194 + $0xd0] sm:$0xff]
        %v271 = vld [vmem:[%s194 + $0xd8] sm:$0xff]
        %v272 = vld [vmem:[%s194 + $0xe0] sm:$0xff]
        %v273 = vld [vmem:[%s194 + $0xe8] sm:$0xff]
        %v274 = vld [vmem:[%s194 + $0xf0] sm:$0xff]
        %v275 = vld [vmem:[%s194 + $0xf8] sm:$0xff]
        %v276 = vld [vmem:[%s231] sm:$0xff]
        %v277 = vld [vmem:[%s231 + $0x8] sm:$0xff]
        %v278 = vld [vmem:[%s231 + $0x10] sm:$0xff]
        %v279 = vld [vmem:[%s231 + $0x18] sm:$0xff]
        %v280 = vld [vmem:[%s231 + $0x20] sm:$0xff]
        %v281 = vld [vmem:[%s231 + $0x28] sm:$0xff]
        %v282 = vld [vmem:[%s231 + $0x30] sm:$0xff]
        %v283 = vld [vmem:[%s231 + $0x38] sm:$0xff]
        %v284 = vld [vmem:[%s231 + $0x40] sm:$0xff]
        %v285 = vld [vmem:[%s231 + $0x48] sm:$0xff]
        %v286 = vld [vmem:[%s231 + $0x50] sm:$0xff]
        %v287 = vld [vmem:[%s231 + $0x58] sm:$0xff]
        %v288 = vld [vmem:[%s231 + $0x60] sm:$0xff]
        %v289 = vld [vmem:[%s231 + $0x68] sm:$0xff]
        %v290 = vld [vmem:[%s231 + $0x70] sm:$0xff]
        %v291 = vld [vmem:[%s231 + $0x78] sm:$0xff]
        %v292 = vld [vmem:[%s234] sm:$0x1]
        %v294 = vlaneseq
        %v295 = vshrl.u32 %v294, 7
        %v296 = vsub.s32 0, %v295
        %v297 = vrot.slane %v292, %v296
        %299 = vmatprep.subr.mxu0 0.0
        %300 = vmatpush1.msra.mxu0 %v291
        %301 = vmatprep.subr.mxu0 0.0
        %302 = vmatpush1.msra.mxu0 %v290
        %303 = vmatprep.subr.mxu0 0.0
        %304 = vmatpush1.msra.mxu0 %v289
        %305 = vmatprep.subr.mxu0 0.0
        %306 = vmatpush1.msra.mxu0 %v288
        %307 = vmatprep.subr.mxu0 0.0
        %308 = vmatpush1.msra.mxu0 %v287
        %309 = vmatprep.subr.mxu0 0.0
        %310 = vmatpush1.msra.mxu0 %v286
        %311 = vmatprep.subr.mxu0 0.0
        %312 = vmatpush1.msra.mxu0 %v285
        %313 = vmatprep.subr.mxu0 0.0
        %314 = vmatpush1.msra.mxu0 %v284
        %315 = vmatprep.subr.mxu0 0.0
        %316 = vmatpush1.msra.mxu0 %v283
        %317 = vmatprep.subr.mxu0 0.0
        %318 = vmatpush1.msra.mxu0 %v282
        %319 = vmatprep.subr.mxu0 0.0
        %320 = vmatpush1.msra.mxu0 %v281
        %321 = vmatprep.subr.mxu0 0.0
        %322 = vmatpush1.msra.mxu0 %v280
        %323 = vmatprep.subr.mxu0 0.0
        %324 = vmatpush1.msra.mxu0 %v279
        %325 = vmatprep.subr.mxu0 0.0
        %326 = vmatpush1.msra.mxu0 %v278
        %327 = vmatprep.subr.mxu0 0.0
        %328 = vmatpush1.msra.mxu0 %v277
        %329 = vmatprep.subr.mxu0 0.0
        %330 = vmatpush1.msra.mxu0 %v276
        %331 = vmatprep.subr.mxu0 0.0
        %332 = vmatpush2.msra.mxu0 0.0
        %333 = vmatprep.subr.mxu0 0.0
        %334 = vmatpush2.msra.mxu0 0.0
        %335 = vmatprep.subr.mxu0 0.0
        %336 = vmatpush2.msra.mxu0 0.0
        %337 = vmatprep.subr.mxu0 0.0
        %338 = vmatpush2.msra.mxu0 0.0
        %339 = vmatprep.subr.mxu0 0.0
        %340 = vmatpush2.msra.mxu0 0.0
        %341 = vmatprep.subr.mxu0 0.0
        %342 = vmatpush2.msra.mxu0 0.0
        %343 = vmatprep.subr.mxu0 0.0
        %344 = vmatpush2.msra.mxu0 0.0
        %345 = vmatprep.subr.mxu0 0.0
        %346 = vmatpush2.msra.mxu0 0.0
        %347 = vmatprep.subr.mxu0 0.0
        %348 = vmatpush2.msra.mxu0 0.0
        %349 = vmatprep.subr.mxu0 0.0
        %350 = vmatpush2.msra.mxu0 0.0
        %351 = vmatprep.subr.mxu0 0.0
        %352 = vmatpush2.msra.mxu0 0.0
        %353 = vmatprep.subr.mxu0 0.0
        %354 = vmatpush2.msra.mxu0 0.0
        %355 = vmatprep.subr.mxu0 0.0
        %356 = vmatpush2.msra.mxu0 0.0
        %357 = vmatprep.subr.mxu0 0.0
        %358 = vmatpush2.msra.mxu0 0.0
        %359 = vmatprep.subr.mxu0 0.0
        %360 = vmatpush2.msra.mxu0 0.0
        %361 = vmatprep.subr.mxu0 0.0
        %362 = vmatpush2.msra.mxu0 0.0
        %363 = vmatprep.mubr.f32.mxu0 0.0
        %364 = vmatmul.mubr.f32.gmra.mxu0 %v244
        %v365 = vpop.f32.mrf.mxu0
        %v366 = vadd.f32 %v297, %v365
        %v367 = vpop.f32.mrf.mxu0
        %368 = vmatprep.mubr.f32.mxu0 0.0
        %369 = vmatmul.mubr.f32.gmra.mxu0 %v245
        %v370 = vpop.f32.mrf.mxu0
        %v371 = vadd.f32 %v297, %v370
        %v372 = vpop.f32.mrf.mxu0
        %373 = vmatprep.mubr.f32.mxu0 0.0
        %374 = vmatmul.mubr.f32.gmra.mxu0 %v246
        %v375 = vpop.f32.mrf.mxu0
        %v376 = vadd.f32 %v297, %v375
        %v377 = vpop.f32.mrf.mxu0
        %378 = vmatprep.mubr.f32.mxu0 0.0
        %379 = vmatmul.mubr.f32.gmra.mxu0 %v247
        %v380 = vpop.f32.mrf.mxu0
        %v381 = vadd.f32 %v297, %v380
        %v382 = vpop.f32.mrf.mxu0
        %383 = vmatprep.mubr.f32.mxu0 0.0
        %384 = vmatmul.mubr.f32.gmra.mxu0 %v248
        %v385 = vpop.f32.mrf.mxu0
        %v386 = vadd.f32 %v297, %v385
        %v387 = vpop.f32.mrf.mxu0
        %388 = vmatprep.mubr.f32.mxu0 0.0
        %389 = vmatmul.mubr.f32.gmra.mxu0 %v249
        %v390 = vpop.f32.mrf.mxu0
        %v391 = vadd.f32 %v297, %v390
        %v392 = vpop.f32.mrf.mxu0
        %393 = vmatprep.mubr.f32.mxu0 0.0
        %394 = vmatmul.mubr.f32.gmra.mxu0 %v250
        %v395 = vpop.f32.mrf.mxu0
        %v396 = vadd.f32 %v297, %v395
        %v397 = vpop.f32.mrf.mxu0
        %398 = vmatprep.mubr.f32.mxu0 0.0
        %399 = vmatmul.mubr.f32.gmra.mxu0 %v251
        %v400 = vpop.f32.mrf.mxu0
        %v401 = vadd.f32 %v297, %v400
        %v402 = vpop.f32.mrf.mxu0
        %403 = vmatprep.mubr.f32.mxu0 0.0
        %404 = vmatmul.mubr.f32.gmra.mxu0 %v252
        %v405 = vpop.f32.mrf.mxu0
        %v406 = vadd.f32 %v297, %v405
        %v407 = vpop.f32.mrf.mxu0
        %408 = vmatprep.mubr.f32.mxu0 0.0
        %409 = vmatmul.mubr.f32.gmra.mxu0 %v253
        %v410 = vpop.f32.mrf.mxu0
        %v411 = vadd.f32 %v297, %v410
        %v412 = vpop.f32.mrf.mxu0
        %413 = vmatprep.mubr.f32.mxu0 0.0
        %414 = vmatmul.mubr.f32.gmra.mxu0 %v254
        %v415 = vpop.f32.mrf.mxu0
        %v416 = vadd.f32 %v297, %v415
        %v417 = vpop.f32.mrf.mxu0
        %418 = vmatprep.mubr.f32.mxu0 0.0
        %419 = vmatmul.mubr.f32.gmra.mxu0 %v255
        %v420 = vpop.f32.mrf.mxu0
        %v421 = vadd.f32 %v297, %v420
        %v422 = vpop.f32.mrf.mxu0
        %423 = vmatprep.mubr.f32.mxu0 0.0
        %424 = vmatmul.mubr.f32.gmra.mxu0 %v256
        %v425 = vpop.f32.mrf.mxu0
        %v426 = vadd.f32 %v297, %v425
        %v427 = vpop.f32.mrf.mxu0
        %428 = vmatprep.mubr.f32.mxu0 0.0
        %429 = vmatmul.mubr.f32.gmra.mxu0 %v257
        %v430 = vpop.f32.mrf.mxu0
        %v431 = vadd.f32 %v297, %v430
        %v432 = vpop.f32.mrf.mxu0
        %433 = vmatprep.mubr.f32.mxu0 0.0
        %434 = vmatmul.mubr.f32.gmra.mxu0 %v258
        %v435 = vpop.f32.mrf.mxu0
        %v436 = vadd.f32 %v297, %v435
        %v437 = vpop.f32.mrf.mxu0
        %438 = vmatprep.mubr.f32.mxu0 0.0
        %439 = vmatmul.mubr.f32.gmra.mxu0 %v259
        %v440 = vpop.f32.mrf.mxu0
        %v441 = vadd.f32 %v297, %v440
        %v442 = vpop.f32.mrf.mxu0
        %443 = vmatprep.mubr.f32.mxu0 0.0
        %444 = vmatmul.mubr.f32.gmra.mxu0 %v260
        %v445 = vpop.f32.mrf.mxu0
        %v446 = vadd.f32 %v297, %v445
        %v447 = vpop.f32.mrf.mxu0
        %448 = vmatprep.mubr.f32.mxu0 0.0
        %449 = vmatmul.mubr.f32.gmra.mxu0 %v261
        %v450 = vpop.f32.mrf.mxu0
        %v451 = vadd.f32 %v297, %v450
        %v452 = vpop.f32.mrf.mxu0
        %453 = vmatprep.mubr.f32.mxu0 0.0
        %454 = vmatmul.mubr.f32.gmra.mxu0 %v262
        %v455 = vpop.f32.mrf.mxu0
        %v456 = vadd.f32 %v297, %v455
        %v457 = vpop.f32.mrf.mxu0
        %458 = vmatprep.mubr.f32.mxu0 0.0
        %459 = vmatmul.mubr.f32.gmra.mxu0 %v263
        %v460 = vpop.f32.mrf.mxu0
        %v461 = vadd.f32 %v297, %v460
        %v462 = vpop.f32.mrf.mxu0
        %463 = vmatprep.mubr.f32.mxu0 0.0
        %464 = vmatmul.mubr.f32.gmra.mxu0 %v264
        %v465 = vpop.f32.mrf.mxu0
        %v466 = vadd.f32 %v297, %v465
        %v467 = vpop.f32.mrf.mxu0
        %468 = vmatprep.mubr.f32.mxu0 0.0
        %469 = vmatmul.mubr.f32.gmra.mxu0 %v265
        %v470 = vpop.f32.mrf.mxu0
        %v471 = vadd.f32 %v297, %v470
        %v472 = vpop.f32.mrf.mxu0
        %473 = vmatprep.mubr.f32.mxu0 0.0
        %474 = vmatmul.mubr.f32.gmra.mxu0 %v266
        %v475 = vpop.f32.mrf.mxu0
        %v476 = vadd.f32 %v297, %v475
        %v477 = vpop.f32.mrf.mxu0
        %478 = vmatprep.mubr.f32.mxu0 0.0
        %479 = vmatmul.mubr.f32.gmra.mxu0 %v267
        %v480 = vpop.f32.mrf.mxu0
        %v481 = vadd.f32 %v297, %v480
        %v482 = vpop.f32.mrf.mxu0
        %483 = vmatprep.mubr.f32.mxu0 0.0
        %484 = vmatmul.mubr.f32.gmra.mxu0 %v268
        %v485 = vpop.f32.mrf.mxu0
        %v486 = vadd.f32 %v297, %v485
        %v487 = vpop.f32.mrf.mxu0
        %488 = vmatprep.mubr.f32.mxu0 0.0
        %489 = vmatmul.mubr.f32.gmra.mxu0 %v269
        %v490 = vpop.f32.mrf.mxu0
        %v491 = vadd.f32 %v297, %v490
        %v492 = vpop.f32.mrf.mxu0
        %493 = vmatprep.mubr.f32.mxu0 0.0
        %494 = vmatmul.mubr.f32.gmra.mxu0 %v270
        %v495 = vpop.f32.mrf.mxu0
        %v496 = vadd.f32 %v297, %v495
        %v497 = vpop.f32.mrf.mxu0
        %498 = vmatprep.mubr.f32.mxu0 0.0
        %499 = vmatmul.mubr.f32.gmra.mxu0 %v271
        %v500 = vpop.f32.mrf.mxu0
        %v501 = vadd.f32 %v297, %v500
        %v502 = vpop.f32.mrf.mxu0
        %503 = vmatprep.mubr.f32.mxu0 0.0
        %504 = vmatmul.mubr.f32.gmra.mxu0 %v272
        %v505 = vpop.f32.mrf.mxu0
        %v506 = vadd.f32 %v297, %v505
        %v507 = vpop.f32.mrf.mxu0
        %508 = vmatprep.mubr.f32.mxu0 0.0
        %509 = vmatmul.mubr.f32.gmra.mxu0 %v273
        %v510 = vpop.f32.mrf.mxu0
        %v511 = vadd.f32 %v297, %v510
        %v512 = vpop.f32.mrf.mxu0
        %513 = vmatprep.mubr.f32.mxu0 0.0
        %514 = vmatmul.mubr.f32.gmra.mxu0 %v274
        %v515 = vpop.f32.mrf.mxu0
        %v516 = vadd.f32 %v297, %v515
        %v517 = vpop.f32.mrf.mxu0
        %518 = vmatprep.mubr.f32.mxu0 0.0
        %519 = vmatmul.mubr.f32.gmra.mxu0 %v275
        %v520 = vpop.f32.mrf.mxu0
        %v521 = vadd.f32 %v297, %v520
        %v522 = vpop.f32.mrf.mxu0
        %523 = vdwg.mxu0
        %v524 = vmax.f32 %v366, 0.0
        %v525 = vmax.f32 %v371, 0.0
        %v526 = vmax.f32 %v376, 0.0
        %v527 = vmax.f32 %v381, 0.0
        %v528 = vmax.f32 %v386, 0.0
        %v529 = vmax.f32 %v391, 0.0
        %v530 = vmax.f32 %v396, 0.0
        %v531 = vmax.f32 %v401, 0.0
        %v532 = vmax.f32 %v406, 0.0
        %v533 = vmax.f32 %v411, 0.0
        %v534 = vmax.f32 %v416, 0.0
        %v535 = vmax.f32 %v421, 0.0
        %v536 = vmax.f32 %v426, 0.0
        %v537 = vmax.f32 %v431, 0.0
        %v538 = vmax.f32 %v436, 0.0
        %v539 = vmax.f32 %v441, 0.0
        %v540 = vmax.f32 %v446, 0.0
        %v541 = vmax.f32 %v451, 0.0
        %v542 = vmax.f32 %v456, 0.0
        %v543 = vmax.f32 %v461, 0.0
        %v544 = vmax.f32 %v466, 0.0
        %v545 = vmax.f32 %v471, 0.0
        %v546 = vmax.f32 %v476, 0.0
        %v547 = vmax.f32 %v481, 0.0
        %v548 = vmax.f32 %v486, 0.0
        %v549 = vmax.f32 %v491, 0.0
        %v550 = vmax.f32 %v496, 0.0
        %v551 = vmax.f32 %v501, 0.0
        %v552 = vmax.f32 %v506, 0.0
        %v553 = vmax.f32 %v511, 0.0
        %v554 = vmax.f32 %v516, 0.0
        %v555 = vmax.f32 %v521, 0.0
        %556 = vst [vmem:[%s242] sm:$0xff] %v524
        %557 = vst [vmem:[%s242 + $0x8] sm:$0xff] %v525
        %558 = vst [vmem:[%s242 + $0x10] sm:$0xff] %v526
        %559 = vst [vmem:[%s242 + $0x18] sm:$0xff] %v527
        %560 = vst [vmem:[%s242 + $0x20] sm:$0xff] %v528
        %561 = vst [vmem:[%s242 + $0x28] sm:$0xff] %v529
        %562 = vst [vmem:[%s242 + $0x30] sm:$0xff] %v530
        %563 = vst [vmem:[%s242 + $0x38] sm:$0xff] %v531
        %564 = vst [vmem:[%s242 + $0x40] sm:$0xff] %v532
        %565 = vst [vmem:[%s242 + $0x48] sm:$0xff] %v533
        %566 = vst [vmem:[%s242 + $0x50] sm:$0xff] %v534
        %567 = vst [vmem:[%s242 + $0x58] sm:$0xff] %v535
        %568 = vst [vmem:[%s242 + $0x60] sm:$0xff] %v536
        %569 = vst [vmem:[%s242 + $0x68] sm:$0xff] %v537
        %570 = vst [vmem:[%s242 + $0x70] sm:$0xff] %v538
        %571 = vst [vmem:[%s242 + $0x78] sm:$0xff] %v539
        %572 = vst [vmem:[%s242 + $0x80] sm:$0xff] %v540
        %573 = vst [vmem:[%s242 + $0x88] sm:$0xff] %v541
        %574 = vst [vmem:[%s242 + $0x90] sm:$0xff] %v542
        %575 = vst [vmem:[%s242 + $0x98] sm:$0xff] %v543
        %576 = vst [vmem:[%s242 + $0xa0] sm:$0xff] %v544
        %577 = vst [vmem:[%s242 + $0xa8] sm:$0xff] %v545
        %578 = vst [vmem:[%s242 + $0xb0] sm:$0xff] %v546
        %579 = vst [vmem:[%s242 + $0xb8] sm:$0xff] %v547
        %580 = vst [vmem:[%s242 + $0xc0] sm:$0xff] %v548
        %581 = vst [vmem:[%s242 + $0xc8] sm:$0xff] %v549
        %582 = vst [vmem:[%s242 + $0xd0] sm:$0xff] %v550
        %583 = vst [vmem:[%s242 + $0xd8] sm:$0xff] %v551
        %584 = vst [vmem:[%s242 + $0xe0] sm:$0xff] %v552
        %585 = vst [vmem:[%s242 + $0xe8] sm:$0xff] %v553
        %586 = vst [vmem:[%s242 + $0xf0] sm:$0xff] %v554
        %587 = vst [vmem:[%s242 + $0xf8] sm:$0xff] %v555
        %s588 = smul.u32 32, %s22
        %p589 = scmp.lt.s32.totalorder %s588, 63
        %s590 = scalar_select %p589, %s588, 63
        %p591 = scmp.lt.s32.totalorder %s21, 0
        %s592 = scalar_select %p591, %s21, 0
        %s593 = sadd.s32 %s592, %s590
        %s594 = smul.addr %s593, 8
        %s595 = scalar_lea.vmem %s3, %s594
        // Predicated region
        $region37: #{_node_apply_impl.1} parent=31 // pred_check
          %p596 = pneg %p127
        $region38: #{_node_apply_impl.1} parent=31 // pred_check_branch
          %598 = sbr.rel (%p596) target = $region40
        $region39: #{_node_apply_impl.1} parent=31 // pred_region
          %s599 = smul.u32 32, %s22
        $region40: #{_node_apply_impl.1} parent=31 // pred_fallthru
          _
      $region32: #{_node_apply_impl.1} parent=5 // pred_fallthru
        _
      %p600 = scmp.le.s32.totalorder 2, %s12
      // Predicated region
      $region41: #{_node_apply_impl.1} parent=5 // pred_check
        %p601 = pneg %p600
      $region42: #{_node_apply_impl.1} parent=5 // pred_check_branch
        %603 = sbr.rel (%p601) target = $region44
      $region43: #{_node_apply_impl.1} parent=5 // pred_region
        %s604 = ssub.s32 %s12, 2
        // Predicated region
        $region45: #{_node_apply_impl.1} parent=43 // pred_check
          %p605 = pneg %p133
        $region46: #{_node_apply_impl.1} parent=43 // pred_check_branch
          %607 = sbr.rel (%p605) target = $region48
        $region47: #{_node_apply_impl.1} parent=43 // pred_region
          %s608 = smul.u32 32, %s24
          %p609 = scmp.lt.s32.totalorder %s608, 63
          %s610 = scalar_select %p609, %s608, 63
          %p611 = scmp.lt.s32.totalorder %s23, 0
          %s612 = scalar_select %p611, %s23, 0
          %s613 = sadd.s32 %s612, %s610
          %s614 = smul.addr %s613, 8
          %s615 = scalar_lea.vmem %s3, %s614
        $region48: #{_node_apply_impl.1} parent=43 // pred_fallthru
          _
      $region44: #{_node_apply_impl.1} parent=5 // pred_fallthru
        _
    $region6: #{_node_apply_impl.1} parent=1 // loop_footer
      %s16 = sadd.s32 1, %s12
    $region7: #{_node_apply_impl.1} parent=1 // loop_footer_branch
      %11 = sbr.rel target = $region3
    $region8: #{_node_apply_impl.1} parent=1 // loop_exit
      _
    %616 = vsyncpa [#allocation3], 1
    %s617 = scalar_lea.sflag [#allocation3], 1
    %618 = vsyncpa %s617, 1

</llo_original>
